<compile_context>
chip_gen: v6e
topology: v6e:2x2x1
jax: 0.10.0
libtpu: 0.0.40
codegen_flags: <defaults>
</compile_context>

<pallas_src>
import functools

import jax
import jax.numpy as jnp
from jax.experimental import pallas as pl
from jax.experimental.pallas import tpu as pltpu

LANE = 128  # keep padding target at 128 (fills the MXU on v5e too; don't over-pad)


def _round_up(n: int, m: int) -> int:
    return (n + m - 1) // m * m


def _linear_kernel(x_ref, w_ref, b_ref, o_ref):
    # y = x @ W^T + b  (W already transposed + lane-padded outside the kernel).
    # f32 accumulation on the MXU, lane-dense (act padded to 128) output store.
    acc = jnp.dot(x_ref[...], w_ref[...], preferred_element_type=jnp.float32)
    o_ref[...] = (acc + b_ref[...]).astype(o_ref.dtype)


def prepare_linear_policy_params(W, b):
    """One-time parameter prep (avoids a per-call W.T materialization):
    W: (act, obs) in PyTorch layout, b: (act,)
    -> w_t_pad: (obs, act_pad), b_pad: (1, act_pad)   with zero padding."""
    act, obs = W.shape
    act_pad = _round_up(act, LANE)
    w_t_pad = jnp.zeros((obs, act_pad), W.dtype).at[:, :act].set(W.T)
    b_pad = jnp.zeros((1, act_pad), b.dtype).at[0, :act].set(b)
    return w_t_pad, b_pad


@functools.partial(jax.jit, static_argnames=("act_length", "batch_tile"))
def linear_policy_forward(x, w_t_pad, b_pad, *, act_length, batch_tile=256):
    """x: (B, obs), w_t_pad: (obs, act_pad), b_pad: (1, act_pad) -> (B, act_length)."""
    B, obs = x.shape
    act_pad = w_t_pad.shape[1]

    if B > batch_tile and B % batch_tile == 0:
        # Batch-tiled path: only x / y stream through HBM per step; weights stay
        # VMEM-resident.  "parallel" lets v7x shard the batch axis across its 2 TCs.
        # Tile sizes here are tiny, so they fit v7x's smaller (64 MiB) VMEM easily.
        y_pad = pl.pallas_call(
            _linear_kernel,
            out_shape=jax.ShapeDtypeStruct((B, act_pad), x.dtype),
            grid_spec=pl.GridSpec(
                grid=(B // batch_tile,),
                in_specs=[
                    pl.BlockSpec((batch_tile, obs), lambda i: (i, 0)),
                    pl.BlockSpec((obs, act_pad), lambda i: (0, 0)),
                    pl.BlockSpec((1, act_pad), lambda i: (0, 0)),
                ],
                out_specs=pl.BlockSpec((batch_tile, act_pad), lambda i: (i, 0)),
            ),
            compiler_params=pltpu.CompilerParams(
                dimension_semantics=("parallel",),
            ),
        )(x, w_t_pad, b_pad)
    else:
        # Small-batch path: no grid at all — whole arrays land in VMEM, no pipeline
        # prologue/double-buffer bookkeeping for a kernel with ~zero useful work.
        # TODO(synk): at (B=8, obs=16, act=8) this is still 100% fixed-overhead bound;
        # the real win is fusing this linear into a larger kernel or letting XLA handle it.
        y_pad = pl.pallas_call(
            _linear_kernel,
            out_shape=jax.ShapeDtypeStruct((B, act_pad), x.dtype),
        )(x, w_t_pad, b_pad)

    return y_pad[:, :act_length]


def init_linear_policy_params(key, obs_length, act_length, dtype=jnp.float32):
    """Deterministic init mimicking PyTorch nn.Linear default:
    U(-1/sqrt(fan_in), 1/sqrt(fan_in)) for both weight and bias."""
    k_w, k_b = jax.random.split(key)
    bound = 1.0 / jnp.sqrt(jnp.array(obs_length, dtype=jnp.float32))
    W = jax.random.uniform(k_w, (act_length, obs_length), dtype=dtype,
                           minval=-bound, maxval=bound)
    b = jax.random.uniform(k_b, (act_length,), dtype=dtype,
                           minval=-bound, maxval=bound)
    return W, b


if __name__ == "__main__":
    key = jax.random.PRNGKey(0)
    k_x, k_p, k_big = jax.random.split(key, 3)

    batch = 8
    obs_length = 16   # obs feature size
    act_length = 8    # action size

    W, b = init_linear_policy_params(k_p, obs_length, act_length)
    w_t_pad, b_pad = prepare_linear_policy_params(W, b)  # transpose + pad once

    # --- small-batch (gridless) path ---
    x = jax.random.normal(k_x, (batch, obs_length), dtype=jnp.float32)
    y = linear_policy_forward(x, w_t_pad, b_pad, act_length=act_length)
    jax.block_until_ready(y)
    y_ref = x @ W.T + b
    assert y.shape == (batch, act_length)
    assert jnp.allclose(y, y_ref, atol=1e-5, rtol=1e-5), "small-batch mismatch"

    # --- large-batch (batch-tiled, weight-resident, parallel) path ---
    big_batch = 1024
    x_big = jax.random.normal(k_big, (big_batch, obs_length), dtype=jnp.float32)
    y_big = linear_policy_forward(x_big, w_t_pad, b_pad,
                                  act_length=act_length, batch_tile=256)
    jax.block_until_ready(y_big)
    y_big_ref = x_big @ W.T + b
    assert y_big.shape == (big_batch, act_length)
    assert jnp.allclose(y_big, y_big_ref, atol=1e-5, rtol=1e-5), "tiled mismatch"

    print("KERNEL_OK")
</pallas_src>

<mosaic_0001>
module attributes {stable_mosaic.version = 11 : i64} {
  func.func @_linear_kernel(%arg0: memref<8x16xf32, #tpu.memory_space<vmem>>, %arg1: memref<16x128xf32, #tpu.memory_space<vmem>>, %arg2: memref<1x128xf32, #tpu.memory_space<vmem>>, %arg3: memref<8x128xf32, #tpu.memory_space<vmem>>) attributes {dimension_semantics = [], scalar_prefetch = 0 : i64, scratch_operands = 0 : i64, tpu.core_type = #tpu.core_type<tc>} {
    %c0 = arith.constant 0 : index
    %c0_0 = arith.constant 0 : index
    %0 = vector.load %arg0[%c0, %c0_0] : memref<8x16xf32, #tpu.memory_space<vmem>>, vector<8x16xf32>
    %c0_1 = arith.constant 0 : index
    %c0_2 = arith.constant 0 : index
    %1 = vector.load %arg1[%c0_1, %c0_2] : memref<16x128xf32, #tpu.memory_space<vmem>>, vector<16x128xf32>
    %cst = arith.constant dense<0.000000e+00> : vector<8x128xf32>
    %2 = tpu.matmul %0, %1, %cst {dimension_numbers = #tpu.dot_dimension_numbers<[1], [0], [0], [1], [0, 0, 1, 1], [], []>} : vector<8x16xf32>, vector<16x128xf32>, vector<8x128xf32> -> vector<8x128xf32>
    %c0_3 = arith.constant 0 : index
    %c0_4 = arith.constant 0 : index
    %3 = vector.load %arg2[%c0_3, %c0_4] : memref<1x128xf32, #tpu.memory_space<vmem>>, vector<1x128xf32>
    %4 = vector.broadcast %3 : vector<1x128xf32> to vector<8x128xf32>
    %5 = arith.addf %2, %4 : vector<8x128xf32>
    %c0_5 = arith.constant 0 : index
    %c0_6 = arith.constant 0 : index
    %6 = vector.load %arg3[%c0_5, %c0_6] : memref<8x128xf32, #tpu.memory_space<vmem>>, vector<8x128xf32>
    tpu.vector_store %arg3[%c0_5, %c0_6], %5 {strides = array<i32>} : memref<8x128xf32, #tpu.memory_space<vmem>>, vector<8x128xf32>,
    return
  }
}

</mosaic_0001>

<llo_original>
// kernel: linear_policy_forward.1
$region0: #{linear_policy_forward.1}
  #allocation0 [shape = 'u32[]', space=smem, size = 0x4, offset = 0x4, fixed_abs, tag = 'smem constant byte address 0x4 - core index']
  #allocation1 [shape = 'u32[144,128]{1,0:T(1,128)}', space=vmem, size = 0x12000, scoped, tag = 'internal scratch']
  %s0 = inlined_call_operand.hbm [shape: f32[8,16], index: 0, kind: input, shape index: {}]
  %s1 = inlined_call_operand.hbm [shape: f32[16,128], index: 1, kind: input, shape index: {}]
  %s2 = inlined_call_operand.vmem [shape: f32[1,128], index: 2, kind: input, shape index: {}]
  %s3 = inlined_call_operand.hbm [shape: f32[8,128], index: 3, kind: output, shape index: {}]
  %s4 = sld [smem:[#allocation0]]
  $region30: #{linear_policy_forward.1} parent=0
    _
  %s6 = ssub.s32 1, %s4
  %s7 = scalar_select 0, %s6, %s4
  $region1: #{linear_policy_forward.1} parent=0
    #allocation2 [shape = 'u8[4096]{0}', space=vmem, size = 0x1000, scoped, tag = 'input window, operand 0, single buffered']
    #allocation3 [shape = 's32[1]{0}', space=sflag, size = 0x4, scoped, tag = 'scoped memory for linear_policy_forward.1']
    #allocation4 [shape = 's32[1]{0}', space=sflag, size = 0x4, scoped, tag = 'scoped memory for linear_policy_forward.1']
    #allocation5 [shape = 'u8[8192]{0}', space=vmem, size = 0x2000, scoped, tag = 'input window, operand 1, single buffered']
    #allocation6 [shape = 's32[1]{0}', space=sflag, size = 0x4, scoped, tag = 'scoped memory for linear_policy_forward.1']
    #allocation7 [shape = 'u8[4096]{0}', space=vmem, size = 0x1000, scoped, tag = 'output window, operand 0, single buffered']
    %8 = vsyncpa [#allocation3], 0
    %9 = vsyncpa [#allocation6], 0
    %10 = vsyncpa [#allocation4], 0
    // Predicated region
    $region2: #{linear_policy_forward.1} parent=1 // pred_check
      _
    $region3: #{linear_policy_forward.1} parent=1 // pred_check_branch
      %12 = sbr.rel (0) target = $region5
    $region4: #{linear_policy_forward.1} parent=1 // pred_region
      %s14 = ssub.s32 128, 128
      %15 = vsyncadd [#allocation3], %s14
      %s17 = sshll.u32 [#allocation2], 4
      %s18 = int_to_ptr.vmem [resolvable:$true] %s17
      %20 = dma.hbm_to_vmem [thread:$0]  %s0, 128, %s18, [#allocation3]
    $region5: #{linear_policy_forward.1} parent=1 // pred_fallthru
      _
    // Predicated region
    $region6: #{linear_policy_forward.1} parent=1 // pred_check
      _
    $region7: #{linear_policy_forward.1} parent=1 // pred_check_branch
      %22 = sbr.rel (0) target = $region9
    $region8: #{linear_policy_forward.1} parent=1 // pred_region
      %s24 = ssub.s32 256, 256
      %25 = vsyncadd [#allocation6], %s24
      %s26 = sshll.u32 [#allocation5], 4
      %s27 = int_to_ptr.vmem [resolvable:$true] %s26
      %32 = dma.hbm_to_vmem [thread:$0]  %s1, 256, %s27, [#allocation6], 128, 128, 8
    $region9: #{linear_policy_forward.1} parent=1 // pred_fallthru
      _
    // Predicated region
    $region10: #{linear_policy_forward.1} parent=1 // pred_check
      _
    $region11: #{linear_policy_forward.1} parent=1 // pred_check_branch
      %34 = sbr.rel (0) target = $region13
    $region12: #{linear_policy_forward.1} parent=1 // pred_region
      _
    $region13: #{linear_policy_forward.1} parent=1 // pred_fallthru
      _
    // Predicated region
    $region14: #{linear_policy_forward.1} parent=1 // pred_check
      _
    $region15: #{linear_policy_forward.1} parent=1 // pred_check_branch
      %36 = sbr.rel (0) target = $region17
    $region16: #{linear_policy_forward.1} parent=1 // pred_region
      %37 = dma.done [#allocation3], 128
    $region17: #{linear_policy_forward.1} parent=1 // pred_fallthru
      _
    // Predicated region
    $region18: #{linear_policy_forward.1} parent=1 // pred_check
      _
    $region19: #{linear_policy_forward.1} parent=1 // pred_check_branch
      %39 = sbr.rel (0) target = $region21
    $region20: #{linear_policy_forward.1} parent=1 // pred_region
      %40 = dma.done [#allocation6], 256
    $region21: #{linear_policy_forward.1} parent=1 // pred_fallthru
      _
    %v41 = vld [vmem:[#allocation2] sm:$0xff]
    %v42 = vld [vmem:[#allocation5] sm:$0xff]
    %v43 = vld [vmem:[#allocation5 + $0x8] sm:$0xff]
    %v44 = vld [vmem:[%s2] sm:$0x1]
    %v46 = vlaneseq
    %v47 = vshrl.u32 %v46, 7
    %v48 = vsub.s32 0, %v47
    %v49 = vrot.slane %v44, %v48
    %vm51 = vcmask 130048
    %v53 = vsel %vm51, %v41, 0
    %55 = vmatprep.subr.mxu0 0.0
    %56 = vmatpush1.msra.mxu0 0.0
    %57 = vmatprep.subr.mxu0 0.0
    %58 = vmatpush1.msra.mxu0 0.0
    %59 = vmatprep.subr.mxu0 0.0
    %60 = vmatpush1.msra.mxu0 0.0
    %61 = vmatprep.subr.mxu0 0.0
    %62 = vmatpush1.msra.mxu0 0.0
    %63 = vmatprep.subr.mxu0 0.0
    %64 = vmatpush1.msra.mxu0 0.0
    %65 = vmatprep.subr.mxu0 0.0
    %66 = vmatpush1.msra.mxu0 0.0
    %67 = vmatprep.subr.mxu0 0.0
    %68 = vmatpush1.msra.mxu0 0.0
    %69 = vmatprep.subr.mxu0 0.0
    %70 = vmatpush1.msra.mxu0 0.0
    %71 = vmatprep.subr.mxu0 0.0
    %72 = vmatpush1.msra.mxu0 0.0
    %73 = vmatprep.subr.mxu0 0.0
    %74 = vmatpush1.msra.mxu0 0.0
    %75 = vmatprep.subr.mxu0 0.0
    %76 = vmatpush1.msra.mxu0 0.0
    %77 = vmatprep.subr.mxu0 0.0
    %78 = vmatpush1.msra.mxu0 0.0
    %79 = vmatprep.subr.mxu0 0.0
    %80 = vmatpush1.msra.mxu0 0.0
    %81 = vmatprep.subr.mxu0 0.0
    %82 = vmatpush1.msra.mxu0 0.0
    %83 = vmatprep.subr.mxu0 0.0
    %84 = vmatpush1.msra.mxu0 %v43
    %85 = vmatprep.subr.mxu0 0.0
    %86 = vmatpush1.msra.mxu0 %v42
    %87 = vmatprep.subr.mxu0 0.0
    %88 = vmatpush2.msra.mxu0 0.0
    %89 = vmatprep.subr.mxu0 0.0
    %90 = vmatpush2.msra.mxu0 0.0
    %91 = vmatprep.subr.mxu0 0.0
    %92 = vmatpush2.msra.mxu0 0.0
    %93 = vmatprep.subr.mxu0 0.0
    %94 = vmatpush2.msra.mxu0 0.0
    %95 = vmatprep.subr.mxu0 0.0
    %96 = vmatpush2.msra.mxu0 0.0
    %97 = vmatprep.subr.mxu0 0.0
    %98 = vmatpush2.msra.mxu0 0.0
    %99 = vmatprep.subr.mxu0 0.0
    %100 = vmatpush2.msra.mxu0 0.0
    %101 = vmatprep.subr.mxu0 0.0
    %102 = vmatpush2.msra.mxu0 0.0
    %103 = vmatprep.subr.mxu0 0.0
    %104 = vmatpush2.msra.mxu0 0.0
    %105 = vmatprep.subr.mxu0 0.0
    %106 = vmatpush2.msra.mxu0 0.0
    %107 = vmatprep.subr.mxu0 0.0
    %108 = vmatpush2.msra.mxu0 0.0
    %109 = vmatprep.subr.mxu0 0.0
    %110 = vmatpush2.msra.mxu0 0.0
    %111 = vmatprep.subr.mxu0 0.0
    %112 = vmatpush2.msra.mxu0 0.0
    %113 = vmatprep.subr.mxu0 0.0
    %114 = vmatpush2.msra.mxu0 0.0
    %115 = vmatprep.subr.mxu0 0.0
    %116 = vmatpush2.msra.mxu0 0.0
    %117 = vmatprep.subr.mxu0 0.0
    %118 = vmatpush2.msra.mxu0 0.0
    %119 = vmatprep.mubr.f32.mxu0 0.0
    %120 = vmatmul.mubr.f32.gmra.mxu0 %v53
    %v121 = vpop.f32.mrf.mxu0
    %v122 = vadd.f32 %v49, %v121
    %v123 = vpop.f32.mrf.mxu0
    %124 = vdwg.mxu0
    %125 = vst [vmem:[#allocation7] sm:$0xff] %v122
    // Predicated region
    $region22: #{linear_policy_forward.1} parent=1 // pred_check
      _
    $region23: #{linear_policy_forward.1} parent=1 // pred_check_branch
      %127 = sbr.rel (0) target = $region25
    $region24: #{linear_policy_forward.1} parent=1 // pred_region
      %s129 = ssub.s32 128, 128
      %130 = vsyncadd [#allocation4], %s129
      %s132 = sshll.u32 [#allocation7], 4
      %s133 = int_to_ptr.vmem [resolvable:$true] %s132
      %135 = dma.vmem_to_hbm [thread:$0]  %s133, 128, %s3, [#allocation4]
    $region25: #{linear_policy_forward.1} parent=1 // pred_fallthru
      _
    // Predicated region
    $region26: #{linear_policy_forward.1} parent=1 // pred_check
      _
    $region27: #{linear_policy_forward.1} parent=1 // pred_check_branch
      %137 = sbr.rel (0) target = $region29
    $region28: #{linear_policy_forward.1} parent=1 // pred_region
      %138 = dma.done [#allocation4], 128
    $region29: #{linear_policy_forward.1} parent=1 // pred_fallthru
      _
    %139 = vsyncpa [#allocation3], 1
    %140 = vsyncpa [#allocation6], 1
    %141 = vsyncpa [#allocation4], 1

</llo_original>
